<compile_context>
chip_gen: v7x
topology: tpu7x:2x2x1
jax: 0.10.0
libtpu: 0.0.40
codegen_flags: <defaults>
</compile_context>

<pallas_src>
import jax
import jax.numpy as jnp
from jax import lax
from jax.experimental import pallas as pl
from jax.experimental.pallas import tpu as pltpu

_EPS = 1e-6
_LANES = 128
_SUBLANES = 8
_MAX_TILE_ROWS = 2048  # (2048,128) f32 block = 1 MiB/input; x2 inputs x2 bufs ~= 4 MiB VMEM


def _make_kernel(tile_rows, blocks_per_slice, n_true, needs_mask):
    def kernel(x_ref, y_ref, out_ref):
        i = pl.program_id(1)

        @pl.when(i == 0)
        def _():
            out_ref[...] = jnp.zeros_like(out_ref)

        x = x_ref[...].astype(jnp.float32)
        y = y_ref[...].astype(jnp.float32)
        d = x - y
        err = jnp.sqrt(d * d + jnp.float32(_EPS))

        if needs_mask:
            # Mask padded / out-of-bounds tail elements by their flat index.
            # TODO(synk): flat index is int32; tensors > 2**31 elements would
            # need 64-bit index math here.
            p = pl.program_id(0)
            row0 = (p * blocks_per_slice + i) * tile_rows
            row_idx = lax.broadcasted_iota(jnp.int32, (tile_rows, _LANES), 0) + row0
            lane_idx = lax.broadcasted_iota(jnp.int32, (tile_rows, _LANES), 1)
            flat_idx = row_idx * _LANES + lane_idx
            err = jnp.where(flat_idx < n_true, err, 0.0)

        # Fold the (tile_rows, 128) block into a lane-dense (8, 128) partial:
        # pure vreg-wise VPU adds (no per-step cross-lane reduction).
        partial = err.reshape(tile_rows // _SUBLANES, _SUBLANES, _LANES).sum(axis=0)
        out_ref[0] = out_ref[0] + partial

    return kernel


def l1_charbonnier_loss(x, y):
    """Pallas equivalent of PyTorch L1_Charbonnier_loss.forward."""
    assert x.shape == y.shape
    n = x.size

    xf = x.reshape(-1)
    yf = y.reshape(-1)

    # Pad the flat tail only up to an (8*128)-element boundary when necessary;
    # padded elements are masked inside the kernel.
    chunk = _SUBLANES * _LANES
    pad = (-n) % chunk
    if pad:
        xf = jnp.pad(xf, (0, pad))
        yf = jnp.pad(yf, (0, pad))

    rows = (n + pad) // _LANES  # multiple of 8
    x2 = xf.reshape(rows, _LANES)
    y2 = yf.reshape(rows, _LANES)

    tile_rows = min(_MAX_TILE_ROWS, rows)
    blocks_total = pl.cdiv(rows, tile_rows)

    # Two independent slices on the 'parallel' axis when they divide evenly
    # (lets v7x shard across its 2 TensorCores); otherwise a single slice.
    n_slices = 2 if (blocks_total >= 2 and blocks_total % 2 == 0) else 1
    blocks_per_slice = blocks_total // n_slices

    covered = n_slices * blocks_per_slice * tile_rows * _LANES
    needs_mask = covered > n

    kernel = _make_kernel(tile_rows, blocks_per_slice, n, needs_mask)

    partials = pl.pallas_call(
        kernel,
        out_shape=jax.ShapeDtypeStruct((n_slices, _SUBLANES, _LANES), jnp.float32),
        grid_spec=pltpu.PrefetchScalarGridSpec(
            num_scalar_prefetch=0,
            grid=(n_slices, blocks_per_slice),
            in_specs=[
                pl.BlockSpec((tile_rows, _LANES),
                             lambda p, i: (p * blocks_per_slice + i, 0)),
                pl.BlockSpec((tile_rows, _LANES),
                             lambda p, i: (p * blocks_per_slice + i, 0)),
            ],
            out_specs=pl.BlockSpec((1, _SUBLANES, _LANES), lambda p, i: (p, 0, 0)),
        ),
        compiler_params=pltpu.CompilerParams(
            dimension_semantics=("parallel", "arbitrary"),
            vmem_limit_bytes=32 * 1024 * 1024,
        ),
    )(x2, y2)

    total = jnp.sum(partials)
    return total / jnp.float32(n)


if __name__ == "__main__":
    key = jax.random.PRNGKey(0)
    kx, ky = jax.random.split(key)
    shape = (2, 4, 16, 16)  # NCHW, matching PyTorch conv-style inputs
    x = jax.random.normal(kx, shape, dtype=jnp.float32)
    y = jax.random.normal(ky, shape, dtype=jnp.float32)

    loss = jax.jit(l1_charbonnier_loss)(x, y)
    jax.block_until_ready(loss)

    # Reference check in plain JAX.
    ref = jnp.mean(jnp.sqrt((x - y) ** 2 + _EPS))
    assert jnp.allclose(loss, ref, rtol=1e-5, atol=1e-6), (loss, ref)

    print("KERNEL_OK")
</pallas_src>

<mosaic_0001>
module attributes {stable_mosaic.version = 11 : i64} {
  func.func @kernel(%arg0: i32, %arg1: i32, %arg2: memref<16x128xf32, #tpu.memory_space<vmem>>, %arg3: memref<16x128xf32, #tpu.memory_space<vmem>>, %arg4: memref<1x8x128xf32, #tpu.memory_space<vmem>>) attributes {dimension_semantics = [#tpu.dimension_semantics<parallel>, #tpu.dimension_semantics<arbitrary>], iteration_bounds = array<i64: 1, 1>, scalar_prefetch = 0 : i64, scratch_operands = 0 : i64, tpu.core_type = #tpu.core_type<tc>, window_params = [{transform_indices = @transform_0, window_bounds = array<i64: 16, 128>}, {transform_indices = @transform_1, window_bounds = array<i64: 16, 128>}, {transform_indices = @transform_2, window_bounds = array<i64: 1, 8, 128>}]} {
    %c0_i32 = arith.constant 0 : i32
    %0 = arith.cmpi eq, %arg1, %c0_i32 : i32
    %1 = arith.extui %0 : i1 to i32
    %c0_i32_0 = arith.constant 0 : i32
    %2 = arith.cmpi ne, %1, %c0_i32_0 : i32
    scf.if %2 {
      %cst_11 = arith.constant 0.000000e+00 : f32
      %18 = vector.broadcast %cst_11 : f32 to vector<1x8x128xf32>
      %c0_12 = arith.constant 0 : index
      %c0_13 = arith.constant 0 : index
      %c0_14 = arith.constant 0 : index
      %19 = vector.load %arg4[%c0_12, %c0_13, %c0_14] : memref<1x8x128xf32, #tpu.memory_space<vmem>>, vector<1x8x128xf32>
      tpu.vector_store %arg4[%c0_12, %c0_13, %c0_14], %18 {strides = array<i32>} : memref<1x8x128xf32, #tpu.memory_space<vmem>>, vector<1x8x128xf32>,
    } else {
    }
    %c0 = arith.constant 0 : index
    %c0_1 = arith.constant 0 : index
    %3 = vector.load %arg2[%c0, %c0_1] : memref<16x128xf32, #tpu.memory_space<vmem>>, vector<16x128xf32>
    %c0_2 = arith.constant 0 : index
    %c0_3 = arith.constant 0 : index
    %4 = vector.load %arg3[%c0_2, %c0_3] : memref<16x128xf32, #tpu.memory_space<vmem>>, vector<16x128xf32>
    %5 = arith.subf %3, %4 : vector<16x128xf32>
    %6 = arith.mulf %5, %5 : vector<16x128xf32>
    %cst = arith.constant 9.99999997E-7 : f32
    %7 = vector.broadcast %cst : f32 to vector<16x128xf32>
    %8 = arith.addf %6, %7 : vector<16x128xf32>
    %9 = math.sqrt %8 : vector<16x128xf32>
    %10 = vector.shape_cast %9 : vector<16x128xf32> to vector<2x8x128xf32>
    %cst_4 = arith.constant dense<0.000000e+00> : vector<8x128xf32>
    %11 = vector.multi_reduction <add>, %10, %cst_4 [0] : vector<2x8x128xf32> to vector<8x128xf32>
    %c0_5 = arith.constant 0 : index
    %c0_6 = arith.constant 0 : index
    %c0_7 = arith.constant 0 : index
    %12 = vector.load %arg4[%c0_5, %c0_6, %c0_7] : memref<1x8x128xf32, #tpu.memory_space<vmem>>, vector<1x8x128xf32>
    %13 = vector.shape_cast %12 : vector<1x8x128xf32> to vector<8x128xf32>
    %14 = arith.addf %13, %11 : vector<8x128xf32>
    %c0_8 = arith.constant 0 : index
    %c0_9 = arith.constant 0 : index
    %c0_10 = arith.constant 0 : index
    %15 = vector.load %arg4[%c0_8, %c0_9, %c0_10] : memref<1x8x128xf32, #tpu.memory_space<vmem>>, vector<1x8x128xf32>
    %16 = vector.shape_cast %15 : vector<1x8x128xf32> to vector<8x128xf32>
    %17 = vector.shape_cast %14 : vector<8x128xf32> to vector<1x8x128xf32>
    tpu.vector_store %arg4[%c0_8, %c0_9, %c0_10], %17 {strides = array<i32>} : memref<1x8x128xf32, #tpu.memory_space<vmem>>, vector<1x8x128xf32>,
    return
  }
  func.func @transform_0(%arg0: i32, %arg1: i32) -> (i32, i32) {
    %c1_i32 = arith.constant 1 : i32
    %0 = arith.muli %arg0, %c1_i32 : i32
    %1 = arith.addi %0, %arg1 : i32
    %c0_i32 = arith.constant 0 : i32
    %c0_i32_0 = arith.constant 0 : i32
    return %1, %c0_i32 : i32, i32
  }
  func.func @transform_1(%arg0: i32, %arg1: i32) -> (i32, i32) {
    %c1_i32 = arith.constant 1 : i32
    %0 = arith.muli %arg0, %c1_i32 : i32
    %1 = arith.addi %0, %arg1 : i32
    %c0_i32 = arith.constant 0 : i32
    %c0_i32_0 = arith.constant 0 : i32
    return %1, %c0_i32 : i32, i32
  }
  func.func @transform_2(%arg0: i32, %arg1: i32) -> (i32, i32, i32) {
    %c0_i32 = arith.constant 0 : i32
    %c0_i32_0 = arith.constant 0 : i32
    %c0_i32_1 = arith.constant 0 : i32
    return %arg0, %c0_i32, %c0_i32_0 : i32, i32, i32
  }
}

</mosaic_0001>

<llo_original>
// kernel: l1_charbonnier_loss.1
$region0: #{l1_charbonnier_loss.1}
  #allocation0 [shape = 'u32[]', space=smem, size = 0x4, offset = 0x4, fixed_abs, tag = 'smem constant byte address 0x4 - core index']
  #allocation1 [shape = 'u32[144,128]{1,0:T(1,128)}', space=vmem, size = 0x12000, scoped, tag = 'internal scratch']
  %s0 = inlined_call_operand.vmem [shape: f32[16,128], index: 0, kind: input, shape index: {}]
  %s1 = inlined_call_operand.vmem [shape: f32[16,128], index: 1, kind: input, shape index: {}]
  %s2 = inlined_call_operand.vmem [shape: f32[1,8,128], index: 2, kind: output, shape index: {}]
  %s3 = sld [smem:[#allocation0]]
  $region22: #{l1_charbonnier_loss.1} parent=0
    _
  %s5 = ssub.s32 1, %s3
  %s6 = scalar_select 0, %s5, %s3
  // Predicated region
  $region2: #{l1_charbonnier_loss.1} parent=0 // pred_check
    _
  $region3: #{l1_charbonnier_loss.1} parent=0 // pred_check_branch
    %8 = sbr.rel (0) target = $region5
  $region4: #{l1_charbonnier_loss.1} parent=0 // pred_region
    %s9 = sadd.s32 0, 0
    %s10 = smul.u32 2, %s9
    %p11 = scmp.lt.s32.totalorder %s10, 1
    %s12 = scalar_select %p11, %s10, 1
    %s13 = smul.addr %s12, 8
    %s14 = scalar_lea.vmem %s0, %s13
    %s15 = sadd.s32 0, 0
    %s16 = smul.u32 2, %s15
  $region5: #{l1_charbonnier_loss.1} parent=0 // pred_fallthru
    _
  // Predicated region
  $region6: #{l1_charbonnier_loss.1} parent=0 // pred_check
    _
  $region7: #{l1_charbonnier_loss.1} parent=0 // pred_check_branch
    %18 = sbr.rel (0) target = $region9
  $region8: #{l1_charbonnier_loss.1} parent=0 // pred_region
    %s19 = sadd.s32 0, 0
    %s20 = smul.u32 2, %s19
    %p21 = scmp.lt.s32.totalorder %s20, 1
    %s22 = scalar_select %p21, %s20, 1
    %s23 = smul.addr %s22, 8
    %s24 = scalar_lea.vmem %s1, %s23
    %s25 = sadd.s32 0, 0
    %s26 = smul.u32 2, %s25
  $region9: #{l1_charbonnier_loss.1} parent=0 // pred_fallthru
    _
  %s27 = sadd.s32 0, 0
  %s28 = smul.u32 2, %s27
  %p29 = scmp.lt.s32.totalorder %s28, 1
  %s30 = scalar_select %p29, %s28, 1
  %s31 = smul.addr %s30, 8
  %s32 = scalar_lea.vmem %s0, %s31
  %s33 = sadd.s32 0, 0
  %s34 = smul.u32 2, %s33
  %p35 = scmp.lt.s32.totalorder %s34, 1
  %s36 = scalar_select %p35, %s34, 1
  %s37 = smul.addr %s36, 8
  %s38 = scalar_lea.vmem %s1, %s37
  %s39 = sadd.s32 0, 0
  %s40 = smul.u32 2, %s39
  %p41 = scmp.lt.s32.totalorder %s40, 1
  %s42 = scalar_select %p41, %s40, 1
  %s43 = smul.addr %s42, 8
  %s44 = scalar_lea.vmem %s0, %s43
  %s45 = sadd.s32 0, 0
  %s46 = smul.u32 2, %s45
  %s47 = sadd.s32 0, 0
  %s48 = smul.u32 2, %s47
  %p49 = scmp.lt.s32.totalorder %s48, 1
  %s50 = scalar_select %p49, %s48, 1
  %s51 = smul.addr %s50, 8
  %s52 = scalar_lea.vmem %s1, %s51
  %s53 = sadd.s32 0, 0
  %s54 = smul.u32 2, %s53
  %p55 = scmp.eq.s32.totalorder 0, 0
  // Predicated region
  $region10: #{l1_charbonnier_loss.1} parent=0 // pred_check
    %p56 = pneg %p55
  $region11: #{l1_charbonnier_loss.1} parent=0 // pred_check_branch
    %58 = sbr.rel (%p56) target = $region13
  $region12: #{l1_charbonnier_loss.1} parent=0 // pred_region
    %59 = vst [vmem:[%s2] sm:$0xff] 0.0
  $region13: #{l1_charbonnier_loss.1} parent=0 // pred_fallthru
    _
  %v60 = vld [vmem:[%s44] sm:$0xff]
  %v61 = vld [vmem:[%s44 + $0x8] sm:$0xff]
  %v62 = vld [vmem:[%s52] sm:$0xff]
  %v63 = vld [vmem:[%s52 + $0x8] sm:$0xff]
  %v64 = vsub.f32 %v60, %v62
  %v65 = vsub.f32 %v61, %v63
  %v66 = vmul.f32 %v64, %v64
  %v67 = vmul.f32 %v65, %v65
  %v68 = vadd.f32 %v66, 1e-06
  %v69 = vadd.f32 %v67, 1e-06
  %v70 = vrsqrt.pop %v68
  %v71 = vmul.f32 %v68, %v70
  %vm72 = vcmp.eq.f32.partialorder %v68, inf
  %v73 = vsel %vm72, %v68, %v71
  %vm74 = vcmp.eq.f32.partialorder %v68, 0.0
  %v75 = vand.u32 %v68, 2147483648
  %v76 = vsel %vm74, %v75, %v73
  %v77 = vrsqrt.pop %v69
  %v78 = vmul.f32 %v69, %v77
  %vm79 = vcmp.eq.f32.partialorder %v69, inf
  %v80 = vsel %vm79, %v69, %v78
  %vm81 = vcmp.eq.f32.partialorder %v69, 0.0
  %v82 = vand.u32 %v69, 2147483648
  %v83 = vsel %vm81, %v82, %v80
  %v84 = vadd.f32 %v76, %v83
  %v85 = vld [vmem:[%s2] sm:$0xff]
  %v86 = vadd.f32 %v85, %v84
  %87 = vst [vmem:[%s2] sm:$0xff] %v86
  // Predicated region
  $region14: #{l1_charbonnier_loss.1} parent=0 // pred_check
    _
  $region15: #{l1_charbonnier_loss.1} parent=0 // pred_check_branch
    %89 = sbr.rel (0) target = $region17
  $region16: #{l1_charbonnier_loss.1} parent=0 // pred_region
    _
  $region17: #{l1_charbonnier_loss.1} parent=0 // pred_fallthru
    _
  // Predicated region
  $region18: #{l1_charbonnier_loss.1} parent=0 // pred_check
    _
  $region19: #{l1_charbonnier_loss.1} parent=0 // pred_check_branch
    %91 = sbr.rel (0) target = $region21
  $region20: #{l1_charbonnier_loss.1} parent=0 // pred_region
    _
  $region21: #{l1_charbonnier_loss.1} parent=0 // pred_fallthru
    _

</llo_original>
